<compile_context>
chip_gen: v5e
topology: v5e:2x2
jax: 0.10.0
libtpu: 0.0.40
codegen_flags: <defaults>
</compile_context>

<pallas_src>
import math

import jax
import jax.numpy as jnp
from jax.experimental import pallas as pl
from jax.experimental.pallas import tpu as pltpu

_LANE = 128                       # lane count of one vreg / natural minor dim
_MIN_PALLAS_BYTES = 256 * 1024    # below this, fused XLA copy wins over dispatch
_MIN_CHUNK_BYTES = 512 * 1024     # target bytes per DMA chunk
_MAX_INFLIGHT = 4                 # max DMAs in flight


# ---------------------------------------------------------------------------
# shape resolution (torch.view semantics, single -1 allowed)
# ---------------------------------------------------------------------------
def _resolve_shape(total, shape):
    shape = list(shape)
    if shape.count(-1) > 1:
        raise ValueError("only one dimension can be inferred (-1)")
    if -1 in shape:
        idx = shape.index(-1)
        known = math.prod([s for i, s in enumerate(shape) if i != idx])
        if known == 0 or total % known != 0:
            raise ValueError(
                f"cannot infer -1 in view shape {tuple(shape)} for {total} elements")
        shape[idx] = total // known
    if math.prod(shape) != total:
        raise ValueError(
            f"view shape {tuple(shape)} is incompatible with {total} elements")
    return tuple(shape)


# ---------------------------------------------------------------------------
# zero-copy path: the true .view() equivalent (metadata only)
# ---------------------------------------------------------------------------
def pallas_reshape(x, *shape):
    """Equivalent of torch Reshape(*shape)(x) == x.view(*shape)."""
    return x.reshape(_resolve_shape(x.size, shape))


# ---------------------------------------------------------------------------
# materialized-copy path: pure HBM->HBM DMA kernel
# ---------------------------------------------------------------------------
def _make_dma_copy_kernel(chunks):
    """chunks: static tuple of (row_start, row_count) covering the buffer."""
    def kernel(x_hbm, o_hbm, sems):
        copies = []
        # Start all chunk DMAs (up to _MAX_INFLIGHT in flight) ...
        for c, (r0, nr) in enumerate(chunks):
            cp = pltpu.make_async_copy(
                x_hbm.at[pl.ds(r0, nr), :],
                o_hbm.at[pl.ds(r0, nr), :],
                sems.at[c],
            )
            cp.start()
            copies.append(cp)
        # ... then drain them.
        for cp in copies:
            cp.wait()
    return kernel


def pallas_reshape_copy(x, *shape):
    """Reshape with a materialized copy; hot path is an HBM->HBM DMA kernel."""
    total = x.size
    target = _resolve_shape(total, shape)
    itemsize = jnp.dtype(x.dtype).itemsize
    nbytes = total * itemsize

    # Small, empty, or non-lane-aligned inputs: explicit XLA copy (still a real
    # materialization -> no silent aliasing), far cheaper than kernel dispatch.
    if total == 0 or nbytes < _MIN_PALLAS_BYTES or total % _LANE != 0:
        return jnp.copy(x).reshape(target)

    rows = total // _LANE
    mat = x.reshape(rows, _LANE)          # metadata-only, lane-dense 2-D view

    # Static chunk plan: up to _MAX_INFLIGHT nearly-equal row ranges, each
    # targeting >= _MIN_CHUNK_BYTES so tiny buffers don't over-chunk.
    n_chunks = int(min(_MAX_INFLIGHT, max(1, nbytes // _MIN_CHUNK_BYTES)))
    n_chunks = max(1, min(n_chunks, rows))
    base, rem = divmod(rows, n_chunks)
    chunks, start = [], 0
    for c in range(n_chunks):
        nr = base + (1 if c < rem else 0)
        chunks.append((start, nr))
        start += nr

    out_mat = pl.pallas_call(
        _make_dma_copy_kernel(tuple(chunks)),
        out_shape=jax.ShapeDtypeStruct((rows, _LANE), x.dtype),
        in_specs=[pl.BlockSpec(memory_space=pl.ANY)],    # raw HBM ref, no auto-DMA
        out_specs=pl.BlockSpec(memory_space=pl.ANY),     # raw HBM ref, DMA'd manually
        scratch_shapes=[pltpu.SemaphoreType.DMA((n_chunks,))],
        cost_estimate=pl.CostEstimate(
            flops=0, transcendentals=0, bytes_accessed=2 * nbytes),
    )(mat)

    # Final reinterpretation is metadata-only.
    return out_mat.reshape(target)


# ---------------------------------------------------------------------------
# demo / self-test
# ---------------------------------------------------------------------------
if __name__ == "__main__":
    key = jax.random.PRNGKey(0)

    # 1) Canonical autoencoder usage: tiny NCHW -> (N, C*H*W) view (zero copy).
    x = jax.random.normal(key, (2, 4, 16, 16), dtype=jnp.float32)
    ref = x.reshape(2, 4 * 16 * 16)
    out_view = jax.block_until_ready(pallas_reshape(x, -1, 4 * 16 * 16))
    assert out_view.shape == ref.shape and out_view.dtype == ref.dtype
    assert bool(jnp.array_equal(out_view, ref))

    # 2) Copy path on the tiny input -> small-input short-circuit (XLA copy).
    out_small = jax.block_until_ready(pallas_reshape_copy(x, -1, 4 * 16 * 16))
    assert out_small.shape == ref.shape and bool(jnp.array_equal(out_small, ref))

    # 3) 2 MiB f32 input -> Pallas HBM->HBM DMA kernel (4 chunks in flight).
    xb = jax.random.normal(key, (4, 8, 128, 128), dtype=jnp.float32)
    refb = xb.reshape(4, 8 * 128 * 128)
    outb = jax.block_until_ready(pallas_reshape_copy(xb, -1, 8 * 128 * 128))
    assert outb.shape == refb.shape and outb.dtype == refb.dtype
    assert bool(jnp.array_equal(outb, refb))

    # 4) bf16 input (1 MiB, 2 DMA chunks) through the same kernel path.
    xh = xb.astype(jnp.bfloat16)
    refh = xh.reshape(4, 8 * 128 * 128)
    outh = jax.block_until_ready(pallas_reshape_copy(xh, -1, 8 * 128 * 128))
    assert outh.dtype == jnp.bfloat16 and bool(jnp.array_equal(outh, refh))

    # 5) Non-128-divisible element count -> explicit XLA-copy fallback.
    x5 = jax.random.normal(key, (3, 5, 7, 9), dtype=jnp.float32)
    ref5 = x5.reshape(3, 5 * 7 * 9)
    out5 = jax.block_until_ready(pallas_reshape_copy(x5, -1, 5 * 7 * 9))
    assert out5.shape == ref5.shape and bool(jnp.array_equal(out5, ref5))

    print("KERNEL_OK")
</pallas_src>

<mosaic_0001>
module attributes {stable_mosaic.version = 11 : i64} {
  func.func @kernel(%arg0: memref<4096x128xf32, #tpu.memory_space<any>>, %arg1: memref<4096x128xf32, #tpu.memory_space<any>>, %arg2: memref<4x!tpu.dma_semaphore, #tpu.memory_space<semaphore_mem>>) attributes {dimension_semantics = [], scalar_prefetch = 0 : i64, scratch_operands = 1 : i64, tpu.core_type = #tpu.core_type<tc>} {
    %c0_i32 = arith.constant 0 : i32
    %c0_i32_0 = arith.constant 0 : i32
    %c0_i32_1 = arith.constant 0 : i32
    %0 = tpu.memref_slice %arg0[%c0_i32_0, %c0_i32_1] : memref<4096x128xf32, #tpu.memory_space<any>> -> memref<1024x128xf32, #tpu.memory_space<any>>
    %c0_i32_2 = arith.constant 0 : i32
    %c0_i32_3 = arith.constant 0 : i32
    %1 = tpu.memref_slice %arg1[%c0_i32_2, %c0_i32_3] : memref<4096x128xf32, #tpu.memory_space<any>> -> memref<1024x128xf32, #tpu.memory_space<any>>
    %2 = tpu.memref_slice %arg2[%c0_i32] : memref<4x!tpu.dma_semaphore, #tpu.memory_space<semaphore_mem>> -> memref<1x!tpu.dma_semaphore, #tpu.memory_space<semaphore_mem>>
    %3 = tpu.memref_squeeze %2 : memref<1x!tpu.dma_semaphore, #tpu.memory_space<semaphore_mem>> -> memref<!tpu.dma_semaphore, #tpu.memory_space<semaphore_mem>>
    tpu.enqueue_dma source(%0 : memref<1024x128xf32, #tpu.memory_space<any>>) target(%1 : memref<1024x128xf32, #tpu.memory_space<any>>) target_semaphore(%3 : memref<!tpu.dma_semaphore, #tpu.memory_space<semaphore_mem>>)
    %c1_i32 = arith.constant 1 : i32
    %c1024_i32 = arith.constant 1024 : i32
    %c0_i32_4 = arith.constant 0 : i32
    %4 = tpu.memref_slice %arg0[%c1024_i32, %c0_i32_4] : memref<4096x128xf32, #tpu.memory_space<any>> -> memref<1024x128xf32, #tpu.memory_space<any>>
    %c1024_i32_5 = arith.constant 1024 : i32
    %c0_i32_6 = arith.constant 0 : i32
    %5 = tpu.memref_slice %arg1[%c1024_i32_5, %c0_i32_6] : memref<4096x128xf32, #tpu.memory_space<any>> -> memref<1024x128xf32, #tpu.memory_space<any>>
    %6 = tpu.memref_slice %arg2[%c1_i32] : memref<4x!tpu.dma_semaphore, #tpu.memory_space<semaphore_mem>> -> memref<1x!tpu.dma_semaphore, #tpu.memory_space<semaphore_mem>>
    %7 = tpu.memref_squeeze %6 : memref<1x!tpu.dma_semaphore, #tpu.memory_space<semaphore_mem>> -> memref<!tpu.dma_semaphore, #tpu.memory_space<semaphore_mem>>
    tpu.enqueue_dma source(%4 : memref<1024x128xf32, #tpu.memory_space<any>>) target(%5 : memref<1024x128xf32, #tpu.memory_space<any>>) target_semaphore(%7 : memref<!tpu.dma_semaphore, #tpu.memory_space<semaphore_mem>>)
    %c2_i32 = arith.constant 2 : i32
    %c2048_i32 = arith.constant 2048 : i32
    %c0_i32_7 = arith.constant 0 : i32
    %8 = tpu.memref_slice %arg0[%c2048_i32, %c0_i32_7] : memref<4096x128xf32, #tpu.memory_space<any>> -> memref<1024x128xf32, #tpu.memory_space<any>>
    %c2048_i32_8 = arith.constant 2048 : i32
    %c0_i32_9 = arith.constant 0 : i32
    %9 = tpu.memref_slice %arg1[%c2048_i32_8, %c0_i32_9] : memref<4096x128xf32, #tpu.memory_space<any>> -> memref<1024x128xf32, #tpu.memory_space<any>>
    %10 = tpu.memref_slice %arg2[%c2_i32] : memref<4x!tpu.dma_semaphore, #tpu.memory_space<semaphore_mem>> -> memref<1x!tpu.dma_semaphore, #tpu.memory_space<semaphore_mem>>
    %11 = tpu.memref_squeeze %10 : memref<1x!tpu.dma_semaphore, #tpu.memory_space<semaphore_mem>> -> memref<!tpu.dma_semaphore, #tpu.memory_space<semaphore_mem>>
    tpu.enqueue_dma source(%8 : memref<1024x128xf32, #tpu.memory_space<any>>) target(%9 : memref<1024x128xf32, #tpu.memory_space<any>>) target_semaphore(%11 : memref<!tpu.dma_semaphore, #tpu.memory_space<semaphore_mem>>)
    %c3_i32 = arith.constant 3 : i32
    %c3072_i32 = arith.constant 3072 : i32
    %c0_i32_10 = arith.constant 0 : i32
    %12 = tpu.memref_slice %arg0[%c3072_i32, %c0_i32_10] : memref<4096x128xf32, #tpu.memory_space<any>> -> memref<1024x128xf32, #tpu.memory_space<any>>
    %c3072_i32_11 = arith.constant 3072 : i32
    %c0_i32_12 = arith.constant 0 : i32
    %13 = tpu.memref_slice %arg1[%c3072_i32_11, %c0_i32_12] : memref<4096x128xf32, #tpu.memory_space<any>> -> memref<1024x128xf32, #tpu.memory_space<any>>
    %14 = tpu.memref_slice %arg2[%c3_i32] : memref<4x!tpu.dma_semaphore, #tpu.memory_space<semaphore_mem>> -> memref<1x!tpu.dma_semaphore, #tpu.memory_space<semaphore_mem>>
    %15 = tpu.memref_squeeze %14 : memref<1x!tpu.dma_semaphore, #tpu.memory_space<semaphore_mem>> -> memref<!tpu.dma_semaphore, #tpu.memory_space<semaphore_mem>>
    tpu.enqueue_dma source(%12 : memref<1024x128xf32, #tpu.memory_space<any>>) target(%13 : memref<1024x128xf32, #tpu.memory_space<any>>) target_semaphore(%15 : memref<!tpu.dma_semaphore, #tpu.memory_space<semaphore_mem>>)
    %c0_i32_13 = arith.constant 0 : i32
    %c0_i32_14 = arith.constant 0 : i32
    %c0_i32_15 = arith.constant 0 : i32
    %16 = tpu.memref_slice %arg0[%c0_i32_14, %c0_i32_15] : memref<4096x128xf32, #tpu.memory_space<any>> -> memref<1024x128xf32, #tpu.memory_space<any>>
    %c0_i32_16 = arith.constant 0 : i32
    %c0_i32_17 = arith.constant 0 : i32
    %17 = tpu.memref_slice %arg1[%c0_i32_16, %c0_i32_17] : memref<4096x128xf32, #tpu.memory_space<any>> -> memref<1024x128xf32, #tpu.memory_space<any>>
    %18 = tpu.memref_slice %arg2[%c0_i32_13] : memref<4x!tpu.dma_semaphore, #tpu.memory_space<semaphore_mem>> -> memref<1x!tpu.dma_semaphore, #tpu.memory_space<semaphore_mem>>
    %19 = tpu.memref_squeeze %18 : memref<1x!tpu.dma_semaphore, #tpu.memory_space<semaphore_mem>> -> memref<!tpu.dma_semaphore, #tpu.memory_space<semaphore_mem>>
    tpu.wait_dma2 semaphore(%19 : memref<!tpu.dma_semaphore, #tpu.memory_space<semaphore_mem>>) src(%16 : memref<1024x128xf32, #tpu.memory_space<any>>) dst(%17 : memref<1024x128xf32, #tpu.memory_space<any>>)
    %c1_i32_18 = arith.constant 1 : i32
    %c1024_i32_19 = arith.constant 1024 : i32
    %c0_i32_20 = arith.constant 0 : i32
    %20 = tpu.memref_slice %arg0[%c1024_i32_19, %c0_i32_20] : memref<4096x128xf32, #tpu.memory_space<any>> -> memref<1024x128xf32, #tpu.memory_space<any>>
    %c1024_i32_21 = arith.constant 1024 : i32
    %c0_i32_22 = arith.constant 0 : i32
    %21 = tpu.memref_slice %arg1[%c1024_i32_21, %c0_i32_22] : memref<4096x128xf32, #tpu.memory_space<any>> -> memref<1024x128xf32, #tpu.memory_space<any>>
    %22 = tpu.memref_slice %arg2[%c1_i32_18] : memref<4x!tpu.dma_semaphore, #tpu.memory_space<semaphore_mem>> -> memref<1x!tpu.dma_semaphore, #tpu.memory_space<semaphore_mem>>
    %23 = tpu.memref_squeeze %22 : memref<1x!tpu.dma_semaphore, #tpu.memory_space<semaphore_mem>> -> memref<!tpu.dma_semaphore, #tpu.memory_space<semaphore_mem>>
    tpu.wait_dma2 semaphore(%23 : memref<!tpu.dma_semaphore, #tpu.memory_space<semaphore_mem>>) src(%20 : memref<1024x128xf32, #tpu.memory_space<any>>) dst(%21 : memref<1024x128xf32, #tpu.memory_space<any>>)
    %c2_i32_23 = arith.constant 2 : i32
    %c2048_i32_24 = arith.constant 2048 : i32
    %c0_i32_25 = arith.constant 0 : i32
    %24 = tpu.memref_slice %arg0[%c2048_i32_24, %c0_i32_25] : memref<4096x128xf32, #tpu.memory_space<any>> -> memref<1024x128xf32, #tpu.memory_space<any>>
    %c2048_i32_26 = arith.constant 2048 : i32
    %c0_i32_27 = arith.constant 0 : i32
    %25 = tpu.memref_slice %arg1[%c2048_i32_26, %c0_i32_27] : memref<4096x128xf32, #tpu.memory_space<any>> -> memref<1024x128xf32, #tpu.memory_space<any>>
    %26 = tpu.memref_slice %arg2[%c2_i32_23] : memref<4x!tpu.dma_semaphore, #tpu.memory_space<semaphore_mem>> -> memref<1x!tpu.dma_semaphore, #tpu.memory_space<semaphore_mem>>
    %27 = tpu.memref_squeeze %26 : memref<1x!tpu.dma_semaphore, #tpu.memory_space<semaphore_mem>> -> memref<!tpu.dma_semaphore, #tpu.memory_space<semaphore_mem>>
    tpu.wait_dma2 semaphore(%27 : memref<!tpu.dma_semaphore, #tpu.memory_space<semaphore_mem>>) src(%24 : memref<1024x128xf32, #tpu.memory_space<any>>) dst(%25 : memref<1024x128xf32, #tpu.memory_space<any>>)
    %c3_i32_28 = arith.constant 3 : i32
    %c3072_i32_29 = arith.constant 3072 : i32
    %c0_i32_30 = arith.constant 0 : i32
    %28 = tpu.memref_slice %arg0[%c3072_i32_29, %c0_i32_30] : memref<4096x128xf32, #tpu.memory_space<any>> -> memref<1024x128xf32, #tpu.memory_space<any>>
    %c3072_i32_31 = arith.constant 3072 : i32
    %c0_i32_32 = arith.constant 0 : i32
    %29 = tpu.memref_slice %arg1[%c3072_i32_31, %c0_i32_32] : memref<4096x128xf32, #tpu.memory_space<any>> -> memref<1024x128xf32, #tpu.memory_space<any>>
    %30 = tpu.memref_slice %arg2[%c3_i32_28] : memref<4x!tpu.dma_semaphore, #tpu.memory_space<semaphore_mem>> -> memref<1x!tpu.dma_semaphore, #tpu.memory_space<semaphore_mem>>
    %31 = tpu.memref_squeeze %30 : memref<1x!tpu.dma_semaphore, #tpu.memory_space<semaphore_mem>> -> memref<!tpu.dma_semaphore, #tpu.memory_space<semaphore_mem>>
    tpu.wait_dma2 semaphore(%31 : memref<!tpu.dma_semaphore, #tpu.memory_space<semaphore_mem>>) src(%28 : memref<1024x128xf32, #tpu.memory_space<any>>) dst(%29 : memref<1024x128xf32, #tpu.memory_space<any>>)
    return
  }
}

</mosaic_0001>

<llo_original>
// kernel: tpu_custom_call.1
$region0: #{tpu_custom_call.1}
  #allocation0 [shape = 'u32[]', space=smem, size = 0x4, offset = 0x4, fixed_abs, tag = 'smem constant byte address 0x4 - core index']
  #allocation1 [shape = 'u32[72,128]{1,0:T(1,128)}', space=vmem, size = 0x9000, scoped, tag = 'internal scratch']
  #allocation2 [shape = 's32[4]{0}', space=sflag, size = 0x10, scoped, tag = 'scratch operand']
  #allocation3 [shape = 's32[]', space=sflag, size = 0x4, offset = 0, fixed_abs, tag = 'sflag constant byte address 0x0 - dummy sync flag']
  #allocation4 [shape = 'u32[0]{0}', space=smem, size = 0, offset = 0, fixed_abs, tag = 'smem constant byte address 0x0 - null']
  #allocation5 [shape = 's32[]', space=sflag, size = 0x4, offset = 0, fixed_abs, tag = 'sflag constant byte address 0x0 - dummy sync flag']
  #allocation6 [shape = 'u32[0]{0}', space=smem, size = 0, offset = 0, fixed_abs, tag = 'smem constant byte address 0x0 - null']
  #allocation7 [shape = 's32[]', space=sflag, size = 0x4, offset = 0, fixed_abs, tag = 'sflag constant byte address 0x0 - dummy sync flag']
  #allocation8 [shape = 'u32[0]{0}', space=smem, size = 0, offset = 0, fixed_abs, tag = 'smem constant byte address 0x0 - null']
  #allocation9 [shape = 's32[]', space=sflag, size = 0x4, offset = 0, fixed_abs, tag = 'sflag constant byte address 0x0 - dummy sync flag']
  #allocation10 [shape = 'u32[0]{0}', space=smem, size = 0, offset = 0, fixed_abs, tag = 'smem constant byte address 0x0 - null']
  %s0 = inlined_call_operand.hbm [shape: f32[4096,128], index: 0, kind: input, shape index: {}]
  %s1 = inlined_call_operand.hbm [shape: f32[4096,128], index: 1, kind: output, shape index: {}]
  %s2 = sld [smem:[#allocation0]]
  $region2: #{tpu_custom_call.1} parent=0
    _
  %s4 = ssub.s32 1, %s2
  %s5 = scalar_select 0, %s4, %s2
  %s7 = sshll.u32 1, 14
  %s8 = sxor.u32 4294967295, %s7
  %s10 = sshll.u32 %s0, 4
  %s11 = int_to_ptr.hbm [resolvable:$true] %s10
  %s12 = sshll.u32 %s1, 4
  %s13 = int_to_ptr.hbm [resolvable:$true] %s12
  %16 = dma.general %s11, 16384, %s13, [#allocation2], [#allocation3], [#allocation4], 0, 0
  %s17 = scalar_lea.hbm %s0, 1024
  %s18 = scalar_lea.hbm %s1, 1024
  %s19 = scalar_lea.sflag [#allocation2], 1
  %s21 = sshll.u32 1, 14
  %s22 = sxor.u32 4294967295, %s21
  %s24 = sshll.u32 %s17, 4
  %s25 = int_to_ptr.hbm [resolvable:$true] %s24
  %s26 = sshll.u32 %s18, 4
  %s27 = int_to_ptr.hbm [resolvable:$true] %s26
  %30 = dma.general %s25, 16384, %s27, %s19, [#allocation5], [#allocation6], 0, 0
  %s31 = scalar_lea.hbm %s0, 2048
  %s32 = scalar_lea.hbm %s1, 2048
  %s33 = scalar_lea.sflag [#allocation2], 2
  %s35 = sshll.u32 1, 14
  %s36 = sxor.u32 4294967295, %s35
  %s38 = sshll.u32 %s31, 4
  %s39 = int_to_ptr.hbm [resolvable:$true] %s38
  %s40 = sshll.u32 %s32, 4
  %s41 = int_to_ptr.hbm [resolvable:$true] %s40
  %44 = dma.general %s39, 16384, %s41, %s33, [#allocation7], [#allocation8], 0, 0
  %s45 = scalar_lea.hbm %s0, 3072
  %s46 = scalar_lea.hbm %s1, 3072
  %s47 = scalar_lea.sflag [#allocation2], 3
  %s49 = sshll.u32 1, 14
  %s50 = sxor.u32 4294967295, %s49
  %s52 = sshll.u32 %s45, 4
  %s53 = int_to_ptr.hbm [resolvable:$true] %s52
  %s54 = sshll.u32 %s46, 4
  %s55 = int_to_ptr.hbm [resolvable:$true] %s54
  %58 = dma.general %s53, 16384, %s55, %s47, [#allocation9], [#allocation10], 0, 0
  %s59 = smul.u32 1024, 1
  %s60 = sshll.u32 %s59, 4
  %61 = dma.done [#allocation2], %s60
  %s62 = sshll.u32 %s59, 4
  %63 = dma.done %s19, %s62
  %s64 = sshll.u32 %s59, 4
  %65 = dma.done %s33, %s64
  %s66 = sshll.u32 %s59, 4
  %67 = dma.done %s47, %s66
  %68 = vsyncmov [#allocation2]
  %s69 = vpop.sfrf %68
  %p70 = scmp.eq.s32.totalorder %s69, 0
  %p71 = pneg %p70
  %73 = shalt.err (%p71)
  %s74 = scalar_lea.sflag [#allocation2], 1
  %75 = vsyncmov %s74
  %s76 = vpop.sfrf %75
  %p77 = scmp.eq.s32.totalorder %s76, 0
  %p78 = pneg %p77
  %80 = shalt.err (%p78)
  %s81 = scalar_lea.sflag [#allocation2], 2
  %82 = vsyncmov %s81
  %s83 = vpop.sfrf %82
  %p84 = scmp.eq.s32.totalorder %s83, 0
  %p85 = pneg %p84
  %87 = shalt.err (%p85)
  %s88 = scalar_lea.sflag [#allocation2], 3
  %89 = vsyncmov %s88
  %s90 = vpop.sfrf %89
  %p91 = scmp.eq.s32.totalorder %s90, 0
  %p92 = pneg %p91
  %94 = shalt.err (%p92)

</llo_original>
